<compile_context>
chip_gen: v7x
topology: tpu7x:2x2x1
jax: 0.10.0
libtpu: 0.0.40
codegen_flags: <defaults>
</compile_context>

<pallas_src>
import numpy as np
import jax
import jax.numpy as jnp
from jax.experimental import pallas as pl
from jax.experimental.pallas import tpu as pltpu


def _ffm_indices(n_feat):
    """Exactly the index lists built in FFM.__init__ (upper-tri / transposed)."""
    x_idx, y_idx = [], []
    for i in range(n_feat):
        for j in range(i, n_feat):
            x_idx.append(i * n_feat + j)
    for j in range(n_feat):
        for i in range(j, n_feat):
            y_idx.append(i * n_feat + j)
    return np.asarray(x_idx, dtype=np.int32), np.asarray(y_idx, dtype=np.int32)


def _round_up(v, m):
    return ((v + m - 1) // m) * m


def _pick_tiles(B, P, D, dtype_bytes, vmem_budget_bytes):
    """Choose (batch_tile, pair_tile).

    Pair tile: whole P stays resident unless it is very large; any tile smaller
    than the full dim must be a multiple of 128 (lane rule). Batch tile: sized so
    double-buffered operands stay well inside VMEM (conservative for v7x: 64 MiB
    total / 32 MiB default scoped VMEM).
    """
    d_pad = _round_up(max(D, 1), 8)            # sublane padding
    tp = P if P <= 2048 else 2048              # 2048 is a multiple of 128
    lanes = _round_up(tp, 128)                 # lane padding of the VMEM tile
    # 2 operands * 2 pipeline buffers * (D x tp) per batch row,
    # + double-buffered (1->8 sublane-padded) output row.
    per_row = dtype_bytes * (2 * 2 * d_pad * lanes + 2 * 8 * lanes)
    tb = max(1, vmem_budget_bytes // per_row)
    if tb >= B:
        tb = B
    else:
        tb = max(8, (tb // 8) * 8)             # keep batch tile 8-aligned
    return int(tb), int(tp)


def _ffm_kernel(x_ref, y_ref, o_ref):
    # x_ref, y_ref: (TB, D, TP) ; o_ref: (TB, 1, TP)
    x = x_ref[...].astype(jnp.float32)
    y = y_ref[...].astype(jnp.float32)
    o_ref[...] = jnp.sum(x * y, axis=1, keepdims=True).astype(o_ref.dtype)


def ffm_forward(inp, n_feat, *, batch_tile=None, pair_tile=None):
    """Pallas equivalent of FFM.forward.

    inp: (B, n_feat*n_feat, D) -> returns (B, P) with P = n_feat*(n_feat+1)//2,
    out[b, p] = sum_d inp[b, x_idices[p], d] * inp[b, y_idices[p], d].
    """
    assert inp.ndim == 3
    B, F2, D = inp.shape
    assert F2 == n_feat * n_feat, "second dim must be n_feat * n_feat"

    x_idx, y_idx = _ffm_indices(n_feat)
    P = int(x_idx.shape[0])

    # --- XLA glue: static triangular gather (compile-time indices) along the
    # contiguous feature axis, then layout plumbing to a lane-dense (B, D, P). ---
    xg = jnp.swapaxes(jnp.take(inp, jnp.asarray(x_idx), axis=1), 1, 2)  # (B, D, P)
    yg = jnp.swapaxes(jnp.take(inp, jnp.asarray(y_idx), axis=1), 1, 2)  # (B, D, P)

    dtype_bytes = inp.dtype.itemsize
    tb_auto, tp_auto = _pick_tiles(B, P, D, dtype_bytes, 12 * 1024 * 1024)
    tb = min(batch_tile or tb_auto, B)
    tp = min(pair_tile or tp_auto, P)
    if tp < P:
        tp = max(128, (tp // 128) * 128)       # partial pair tiles must be 128-aligned

    grid = (pl.cdiv(B, tb), pl.cdiv(P, tp))

    out3 = pl.pallas_call(
        _ffm_kernel,
        out_shape=jax.ShapeDtypeStruct((B, 1, P), inp.dtype),
        grid=grid,
        in_specs=[
            pl.BlockSpec((tb, D, tp), lambda b, p: (b, 0, p)),
            pl.BlockSpec((tb, D, tp), lambda b, p: (b, 0, p)),
        ],
        out_specs=pl.BlockSpec((tb, 1, tp), lambda b, p: (b, 0, p)),
        compiler_params=pltpu.CompilerParams(
            dimension_semantics=("parallel", "parallel"),
            vmem_limit_bytes=32 * 1024 * 1024,
        ),
    )(xg, yg)

    return out3.reshape(B, P)


if __name__ == "__main__":
    # Small deterministic example consistent with FFM's (B, n_feat*n_feat, D) input.
    n_feat, D, B = 8, 8, 16
    F2 = n_feat * n_feat
    key = jax.random.PRNGKey(0)
    inp = jax.random.normal(key, (B, F2, D), dtype=jnp.float32)

    out = ffm_forward(inp, n_feat)
    out = jax.block_until_ready(out)

    # Pure-JAX reference replicating the PyTorch forward exactly.
    x_idx, y_idx = _ffm_indices(n_feat)
    ref_x = inp[:, x_idx, :]
    ref_y = inp[:, y_idx, :]
    ref = jnp.sum(ref_x * ref_y, axis=2)

    P = n_feat * (n_feat + 1) // 2
    assert out.shape == (B, P), out.shape
    assert jnp.allclose(out, ref, atol=1e-5, rtol=1e-5)

    print("KERNEL_OK")
</pallas_src>

<mosaic_0001>
module attributes {stable_mosaic.version = 11 : i64} {
  func.func @_ffm_kernel(%arg0: i32, %arg1: i32, %arg2: memref<16x8x36xf32, #tpu.memory_space<vmem>>, %arg3: memref<16x8x36xf32, #tpu.memory_space<vmem>>, %arg4: memref<16x1x36xf32, #tpu.memory_space<vmem>>) attributes {dimension_semantics = [#tpu.dimension_semantics<parallel>, #tpu.dimension_semantics<parallel>], iteration_bounds = array<i64: 1, 1>, scalar_prefetch = 0 : i64, scratch_operands = 0 : i64, tpu.core_type = #tpu.core_type<tc>, window_params = [{transform_indices = @transform_0, window_bounds = array<i64: 16, 8, 36>}, {transform_indices = @transform_1, window_bounds = array<i64: 16, 8, 36>}, {transform_indices = @transform_2, window_bounds = array<i64: 16, 1, 36>}]} {
    %c0 = arith.constant 0 : index
    %c0_0 = arith.constant 0 : index
    %c0_1 = arith.constant 0 : index
    %0 = vector.load %arg2[%c0, %c0_0, %c0_1] : memref<16x8x36xf32, #tpu.memory_space<vmem>>, vector<16x8x36xf32>
    %c0_2 = arith.constant 0 : index
    %c0_3 = arith.constant 0 : index
    %c0_4 = arith.constant 0 : index
    %1 = vector.load %arg3[%c0_2, %c0_3, %c0_4] : memref<16x8x36xf32, #tpu.memory_space<vmem>>, vector<16x8x36xf32>
    %2 = arith.mulf %0, %1 : vector<16x8x36xf32>
    %cst = arith.constant dense<0.000000e+00> : vector<16x36xf32>
    %3 = vector.multi_reduction <add>, %2, %cst [1] : vector<16x8x36xf32> to vector<16x36xf32>
    %4 = vector.shape_cast %3 : vector<16x36xf32> to vector<16x1x36xf32>
    %c0_5 = arith.constant 0 : index
    %c0_6 = arith.constant 0 : index
    %c0_7 = arith.constant 0 : index
    %5 = vector.load %arg4[%c0_5, %c0_6, %c0_7] : memref<16x1x36xf32, #tpu.memory_space<vmem>>, vector<16x1x36xf32>
    tpu.vector_store %arg4[%c0_5, %c0_6, %c0_7], %4 {strides = array<i32>} : memref<16x1x36xf32, #tpu.memory_space<vmem>>, vector<16x1x36xf32>,
    return
  }
  func.func @transform_0(%arg0: i32, %arg1: i32) -> (i32, i32, i32) {
    %c0_i32 = arith.constant 0 : i32
    %c0_i32_0 = arith.constant 0 : i32
    return %arg0, %c0_i32, %arg1 : i32, i32, i32
  }
  func.func @transform_1(%arg0: i32, %arg1: i32) -> (i32, i32, i32) {
    %c0_i32 = arith.constant 0 : i32
    %c0_i32_0 = arith.constant 0 : i32
    return %arg0, %c0_i32, %arg1 : i32, i32, i32
  }
  func.func @transform_2(%arg0: i32, %arg1: i32) -> (i32, i32, i32) {
    %c0_i32 = arith.constant 0 : i32
    %c0_i32_0 = arith.constant 0 : i32
    return %arg0, %c0_i32, %arg1 : i32, i32, i32
  }
}

</mosaic_0001>

<llo_original>
// kernel: tpu_custom_call.1
$region0: #{tpu_custom_call.1}
  #allocation0 [shape = 'u32[]', space=smem, size = 0x4, offset = 0x4, fixed_abs, tag = 'smem constant byte address 0x4 - core index']
  #allocation1 [shape = 'u32[144,128]{1,0:T(1,128)}', space=vmem, size = 0x12000, scoped, tag = 'internal scratch']
  %s0 = inlined_call_operand.hbm [shape: f32[16,8,36], index: 0, kind: input, shape index: {}]
  %s1 = inlined_call_operand.hbm [shape: f32[16,8,36], index: 1, kind: input, shape index: {}]
  %s2 = inlined_call_operand.hbm [shape: f32[16,1,36], index: 2, kind: output, shape index: {}]
  %s3 = sld [smem:[#allocation0]]
  $region26: #{tpu_custom_call.1} parent=0
    _
  %s5 = ssub.s32 1, %s3
  %s6 = scalar_select 0, %s5, %s3
  $region1: #{tpu_custom_call.1} parent=0
    #allocation2 [shape = 'u8[65536]{0}', space=vmem, size = 0x10000, scoped, tag = 'input window, operand 0, single buffered']
    #allocation3 [shape = 's32[1]{0}', space=sflag, size = 0x4, scoped, tag = 'scoped memory for tpu_custom_call.1']
    #allocation4 [shape = 's32[1]{0}', space=sflag, size = 0x4, scoped, tag = 'scoped memory for tpu_custom_call.1']
    #allocation5 [shape = 'u8[65536]{0}', space=vmem, size = 0x10000, scoped, tag = 'input window, operand 1, single buffered']
    #allocation6 [shape = 's32[1]{0}', space=sflag, size = 0x4, scoped, tag = 'scoped memory for tpu_custom_call.1']
    #allocation7 [shape = 'u8[8192]{0}', space=vmem, size = 0x2000, scoped, tag = 'output window, operand 0, single buffered']
    %7 = vsyncpa [#allocation3], 0
    %8 = vsyncpa [#allocation6], 0
    %9 = vsyncpa [#allocation4], 0
    // Predicated region
    $region2: #{tpu_custom_call.1} parent=1 // pred_check
      _
    $region3: #{tpu_custom_call.1} parent=1 // pred_check_branch
      %11 = sbr.rel (0) target = $region5
    $region4: #{tpu_custom_call.1} parent=1 // pred_region
      %s13 = ssub.s32 2048, 2048
      %14 = vsyncadd [#allocation3], %s13
      %s15 = sshll.u32 [#allocation2], 4
      %s16 = int_to_ptr.vmem [resolvable:$true] %s15
      %21 = dma.hbm_to_vmem [thread:$0]  %s0, 2048, %s16, [#allocation3], 128, 128, 8
    $region5: #{tpu_custom_call.1} parent=1 // pred_fallthru
      _
    // Predicated region
    $region6: #{tpu_custom_call.1} parent=1 // pred_check
      _
    $region7: #{tpu_custom_call.1} parent=1 // pred_check_branch
      %23 = sbr.rel (0) target = $region9
    $region8: #{tpu_custom_call.1} parent=1 // pred_region
      %s25 = ssub.s32 2048, 2048
      %26 = vsyncadd [#allocation6], %s25
      %s27 = sshll.u32 [#allocation5], 4
      %s28 = int_to_ptr.vmem [resolvable:$true] %s27
      %33 = dma.hbm_to_vmem [thread:$0]  %s1, 2048, %s28, [#allocation6], 128, 128, 8
    $region9: #{tpu_custom_call.1} parent=1 // pred_fallthru
      _
    // Predicated region
    $region10: #{tpu_custom_call.1} parent=1 // pred_check
      _
    $region11: #{tpu_custom_call.1} parent=1 // pred_check_branch
      %35 = sbr.rel (0) target = $region13
    $region12: #{tpu_custom_call.1} parent=1 // pred_region
      %36 = dma.done [#allocation3], 2048
    $region13: #{tpu_custom_call.1} parent=1 // pred_fallthru
      _
    // Predicated region
    $region14: #{tpu_custom_call.1} parent=1 // pred_check
      _
    $region15: #{tpu_custom_call.1} parent=1 // pred_check_branch
      %38 = sbr.rel (0) target = $region17
    $region16: #{tpu_custom_call.1} parent=1 // pred_region
      %39 = dma.done [#allocation6], 2048
    $region17: #{tpu_custom_call.1} parent=1 // pred_fallthru
      _
    %v40 = vld [vmem:[#allocation2] sm:$0xff]
    %v41 = vld [vmem:[#allocation2 + $0x8] sm:$0xff]
    %v42 = vld [vmem:[#allocation2 + $0x10] sm:$0xff]
    %v43 = vld [vmem:[#allocation2 + $0x18] sm:$0xff]
    %v44 = vld [vmem:[#allocation2 + $0x20] sm:$0xff]
    %v45 = vld [vmem:[#allocation2 + $0x28] sm:$0xff]
    %v46 = vld [vmem:[#allocation2 + $0x30] sm:$0xff]
    %v47 = vld [vmem:[#allocation2 + $0x38] sm:$0xff]
    %v48 = vld [vmem:[#allocation2 + $0x40] sm:$0xff]
    %v49 = vld [vmem:[#allocation2 + $0x48] sm:$0xff]
    %v50 = vld [vmem:[#allocation2 + $0x50] sm:$0xff]
    %v51 = vld [vmem:[#allocation2 + $0x58] sm:$0xff]
    %v52 = vld [vmem:[#allocation2 + $0x60] sm:$0xff]
    %v53 = vld [vmem:[#allocation2 + $0x68] sm:$0xff]
    %v54 = vld [vmem:[#allocation2 + $0x70] sm:$0xff]
    %v55 = vld [vmem:[#allocation2 + $0x78] sm:$0xff]
    %v56 = vld [vmem:[#allocation5] sm:$0xff]
    %v57 = vld [vmem:[#allocation5 + $0x8] sm:$0xff]
    %v58 = vld [vmem:[#allocation5 + $0x10] sm:$0xff]
    %v59 = vld [vmem:[#allocation5 + $0x18] sm:$0xff]
    %v60 = vld [vmem:[#allocation5 + $0x20] sm:$0xff]
    %v61 = vld [vmem:[#allocation5 + $0x28] sm:$0xff]
    %v62 = vld [vmem:[#allocation5 + $0x30] sm:$0xff]
    %v63 = vld [vmem:[#allocation5 + $0x38] sm:$0xff]
    %v64 = vld [vmem:[#allocation5 + $0x40] sm:$0xff]
    %v65 = vld [vmem:[#allocation5 + $0x48] sm:$0xff]
    %v66 = vld [vmem:[#allocation5 + $0x50] sm:$0xff]
    %v67 = vld [vmem:[#allocation5 + $0x58] sm:$0xff]
    %v68 = vld [vmem:[#allocation5 + $0x60] sm:$0xff]
    %v69 = vld [vmem:[#allocation5 + $0x68] sm:$0xff]
    %v70 = vld [vmem:[#allocation5 + $0x70] sm:$0xff]
    %v71 = vld [vmem:[#allocation5 + $0x78] sm:$0xff]
    %v72 = vmul.f32 %v40, %v56
    %v73 = vmul.f32 %v41, %v57
    %v74 = vmul.f32 %v42, %v58
    %v75 = vmul.f32 %v43, %v59
    %v76 = vmul.f32 %v44, %v60
    %v77 = vmul.f32 %v45, %v61
    %v78 = vmul.f32 %v46, %v62
    %v79 = vmul.f32 %v47, %v63
    %v80 = vmul.f32 %v48, %v64
    %v81 = vmul.f32 %v49, %v65
    %v82 = vmul.f32 %v50, %v66
    %v83 = vmul.f32 %v51, %v67
    %v84 = vmul.f32 %v52, %v68
    %v85 = vmul.f32 %v53, %v69
    %v86 = vmul.f32 %v54, %v70
    %v87 = vmul.f32 %v55, %v71
    %vm88 = vcmask 293888
    %v89 = vsel %vm88, %v72, 0.0
    %v90 = vrot.slane %v89, 4
    %v91 = vadd.f32 %v89, %v90
    %v92 = vrot.slane %v91, 2
    %v93 = vadd.f32 %v91, %v92
    %v94 = vrot.slane %v93, 1
    %v95 = vadd.f32 %v93, %v94
    %v96 = vsel %vm88, %v73, 0.0
    %v97 = vrot.slane %v96, 4
    %v98 = vadd.f32 %v96, %v97
    %v99 = vrot.slane %v98, 2
    %v100 = vadd.f32 %v98, %v99
    %v101 = vrot.slane %v100, 1
    %v102 = vadd.f32 %v100, %v101
    %v103 = vsel %vm88, %v74, 0.0
    %v104 = vrot.slane %v103, 4
    %v105 = vadd.f32 %v103, %v104
    %v106 = vrot.slane %v105, 2
    %v107 = vadd.f32 %v105, %v106
    %v108 = vrot.slane %v107, 1
    %v109 = vadd.f32 %v107, %v108
    %v110 = vsel %vm88, %v75, 0.0
    %v111 = vrot.slane %v110, 4
    %v112 = vadd.f32 %v110, %v111
    %v113 = vrot.slane %v112, 2
    %v114 = vadd.f32 %v112, %v113
    %v115 = vrot.slane %v114, 1
    %v116 = vadd.f32 %v114, %v115
    %v117 = vsel %vm88, %v76, 0.0
    %v118 = vrot.slane %v117, 4
    %v119 = vadd.f32 %v117, %v118
    %v120 = vrot.slane %v119, 2
    %v121 = vadd.f32 %v119, %v120
    %v122 = vrot.slane %v121, 1
    %v123 = vadd.f32 %v121, %v122
    %v124 = vsel %vm88, %v77, 0.0
    %v125 = vrot.slane %v124, 4
    %v126 = vadd.f32 %v124, %v125
    %v127 = vrot.slane %v126, 2
    %v128 = vadd.f32 %v126, %v127
    %v129 = vrot.slane %v128, 1
    %v130 = vadd.f32 %v128, %v129
    %v131 = vsel %vm88, %v78, 0.0
    %v132 = vrot.slane %v131, 4
    %v133 = vadd.f32 %v131, %v132
    %v134 = vrot.slane %v133, 2
    %v135 = vadd.f32 %v133, %v134
    %v136 = vrot.slane %v135, 1
    %v137 = vadd.f32 %v135, %v136
    %v138 = vsel %vm88, %v79, 0.0
    %v139 = vrot.slane %v138, 4
    %v140 = vadd.f32 %v138, %v139
    %v141 = vrot.slane %v140, 2
    %v142 = vadd.f32 %v140, %v141
    %v143 = vrot.slane %v142, 1
    %v144 = vadd.f32 %v142, %v143
    %v145 = vsel %vm88, %v80, 0.0
    %v146 = vrot.slane %v145, 4
    %v147 = vadd.f32 %v145, %v146
    %v148 = vrot.slane %v147, 2
    %v149 = vadd.f32 %v147, %v148
    %v150 = vrot.slane %v149, 1
    %v151 = vadd.f32 %v149, %v150
    %v152 = vsel %vm88, %v81, 0.0
    %v153 = vrot.slane %v152, 4
    %v154 = vadd.f32 %v152, %v153
    %v155 = vrot.slane %v154, 2
    %v156 = vadd.f32 %v154, %v155
    %v157 = vrot.slane %v156, 1
    %v158 = vadd.f32 %v156, %v157
    %v159 = vsel %vm88, %v82, 0.0
    %v160 = vrot.slane %v159, 4
    %v161 = vadd.f32 %v159, %v160
    %v162 = vrot.slane %v161, 2
    %v163 = vadd.f32 %v161, %v162
    %v164 = vrot.slane %v163, 1
    %v165 = vadd.f32 %v163, %v164
    %v166 = vsel %vm88, %v83, 0.0
    %v167 = vrot.slane %v166, 4
    %v168 = vadd.f32 %v166, %v167
    %v169 = vrot.slane %v168, 2
    %v170 = vadd.f32 %v168, %v169
    %v171 = vrot.slane %v170, 1
    %v172 = vadd.f32 %v170, %v171
    %v173 = vsel %vm88, %v84, 0.0
    %v174 = vrot.slane %v173, 4
    %v175 = vadd.f32 %v173, %v174
    %v176 = vrot.slane %v175, 2
    %v177 = vadd.f32 %v175, %v176
    %v178 = vrot.slane %v177, 1
    %v179 = vadd.f32 %v177, %v178
    %v180 = vsel %vm88, %v85, 0.0
    %v181 = vrot.slane %v180, 4
    %v182 = vadd.f32 %v180, %v181
    %v183 = vrot.slane %v182, 2
    %v184 = vadd.f32 %v182, %v183
    %v185 = vrot.slane %v184, 1
    %v186 = vadd.f32 %v184, %v185
    %v187 = vsel %vm88, %v86, 0.0
    %v188 = vrot.slane %v187, 4
    %v189 = vadd.f32 %v187, %v188
    %v190 = vrot.slane %v189, 2
    %v191 = vadd.f32 %v189, %v190
    %v192 = vrot.slane %v191, 1
    %v193 = vadd.f32 %v191, %v192
    %v194 = vsel %vm88, %v87, 0.0
    %v195 = vrot.slane %v194, 4
    %v196 = vadd.f32 %v194, %v195
    %v197 = vrot.slane %v196, 2
    %v198 = vadd.f32 %v196, %v197
    %v199 = vrot.slane %v198, 1
    %v200 = vadd.f32 %v198, %v199
    %vm201 = vcmask 286720
    %202 = vst.msk [vmem:[#allocation7] sm:$0x1] %vm201, %v95
    %203 = vst.msk [vmem:[#allocation7 + $0x1] sm:$0x1] %vm201, %v102
    %204 = vst.msk [vmem:[#allocation7 + $0x2] sm:$0x1] %vm201, %v109
    %205 = vst.msk [vmem:[#allocation7 + $0x3] sm:$0x1] %vm201, %v116
    %206 = vst.msk [vmem:[#allocation7 + $0x4] sm:$0x1] %vm201, %v123
    %207 = vst.msk [vmem:[#allocation7 + $0x5] sm:$0x1] %vm201, %v130
    %208 = vst.msk [vmem:[#allocation7 + $0x6] sm:$0x1] %vm201, %v137
    %209 = vst.msk [vmem:[#allocation7 + $0x7] sm:$0x1] %vm201, %v144
    %210 = vst.msk [vmem:[#allocation7 + $0x8] sm:$0x1] %vm201, %v151
    %211 = vst.msk [vmem:[#allocation7 + $0x9] sm:$0x1] %vm201, %v158
    %212 = vst.msk [vmem:[#allocation7 + $0xa] sm:$0x1] %vm201, %v165
    %213 = vst.msk [vmem:[#allocation7 + $0xb] sm:$0x1] %vm201, %v172
    %214 = vst.msk [vmem:[#allocation7 + $0xc] sm:$0x1] %vm201, %v179
    %215 = vst.msk [vmem:[#allocation7 + $0xd] sm:$0x1] %vm201, %v186
    %216 = vst.msk [vmem:[#allocation7 + $0xe] sm:$0x1] %vm201, %v193
    %217 = vst.msk [vmem:[#allocation7 + $0xf] sm:$0x1] %vm201, %v200
    // Predicated region
    $region18: #{tpu_custom_call.1} parent=1 // pred_check
      _
    $region19: #{tpu_custom_call.1} parent=1 // pred_check_branch
      %219 = sbr.rel (0) target = $region21
    $region20: #{tpu_custom_call.1} parent=1 // pred_region
      %s221 = ssub.s32 256, 256
      %222 = vsyncadd [#allocation4], %s221
      %s223 = sshll.u32 [#allocation7], 4
      %s224 = int_to_ptr.vmem [resolvable:$true] %s223
      %229 = dma.vmem_to_hbm [thread:$0]  %s224, 256, %s2, [#allocation4], 16, 16, 1
    $region21: #{tpu_custom_call.1} parent=1 // pred_fallthru
      _
    // Predicated region
    $region22: #{tpu_custom_call.1} parent=1 // pred_check
      _
    $region23: #{tpu_custom_call.1} parent=1 // pred_check_branch
      %231 = sbr.rel (0) target = $region25
    $region24: #{tpu_custom_call.1} parent=1 // pred_region
      %232 = dma.done [#allocation4], 256
    $region25: #{tpu_custom_call.1} parent=1 // pred_fallthru
      _
    %233 = vsyncpa [#allocation3], 1
    %234 = vsyncpa [#allocation6], 1
    %235 = vsyncpa [#allocation4], 1

</llo_original>
